<compile_context>
chip_gen: v5e
topology: v5e:2x2
jax: 0.10.0
libtpu: 0.0.40
codegen_flags: <defaults>
</compile_context>

<pallas_src>
import jax
import jax.numpy as jnp
from jax.experimental import pallas as pl
from jax.experimental.pallas import tpu as pltpu

BN_EPS = 0.001


def _round_up(x, m):
    return (x + m - 1) // m * m


# ---- pass 1: per-feature sum and sum-of-squares of y = x @ W over all rows ----------
def _stats_kernel(x_ref, w_ref, stats_ref):
    @pl.when(pl.program_id(0) == 0)
    def _():
        stats_ref[...] = jnp.zeros_like(stats_ref)

    y = jnp.dot(x_ref[...], w_ref[...], preferred_element_type=jnp.float32)  # (tn, F)
    stats_ref[0:1, :] += jnp.sum(y, axis=0, keepdims=True)
    stats_ref[1:2, :] += jnp.sum(y * y, axis=0, keepdims=True)


# ---- pass 2: recompute y per tile, apply folded BN scale/shift + ReLU ----------------
def _apply_kernel(x_ref, w_ref, scale_ref, shift_ref, o_ref):
    y = jnp.dot(x_ref[...], w_ref[...], preferred_element_type=jnp.float32)  # (tn, F)
    o_ref[...] = jnp.maximum(y * scale_ref[...] + shift_ref[...], 0.0).astype(o_ref.dtype)


def fusion_forward(lip, hand, w, b, gamma, beta, *, tile_n=512):
    """lip: (B, T, d_lip), hand: (B, T, d_hand), w: (din, F), b/gamma/beta: (F,).

    Equivalent to relu(BatchNorm1d_train(Linear(cat(lip, hand, dim=2)))) of the torch
    module. The linear bias is a mathematical no-op under the batch-mean subtraction,
    so it is not materialized in the kernels.
    """
    del b  # cancels exactly against BatchNorm's batch-mean subtraction
    B, T, d_lip = lip.shape
    d_hand = hand.shape[2]
    din, fdim = w.shape
    assert din == d_lip + d_hand
    N = B * T
    dtype = lip.dtype

    # One contiguous (N, din) activation -> single K=din matmul in-kernel.
    x = jnp.concatenate([lip.reshape(N, d_lip), hand.reshape(N, d_hand)], axis=1)
    x = x.astype(dtype)
    w = w.astype(dtype)

    # Row tiling: pad N up to a multiple of tile_n (zero rows add nothing to the sums;
    # their outputs are sliced off at the end).
    tile_n = min(tile_n, _round_up(N, 8))
    n_pad = _round_up(N, tile_n)
    if n_pad != N:
        x = jnp.pad(x, ((0, n_pad - N), (0, 0)))
    num_tiles = n_pad // tile_n

    # ---- pass 1: accumulate per-feature sum / sum-of-squares ----
    stats = pl.pallas_call(
        _stats_kernel,
        out_shape=jax.ShapeDtypeStruct((2, fdim), jnp.float32),
        grid=(num_tiles,),
        in_specs=[
            pl.BlockSpec((tile_n, din), lambda i: (i, 0)),
            pl.BlockSpec((din, fdim), lambda i: (0, 0)),
        ],
        out_specs=pl.BlockSpec((2, fdim), lambda i: (0, 0)),
        compiler_params=pltpu.CompilerParams(dimension_semantics=("arbitrary",)),
    )(x, w)

    # Fold BN (batch stats, biased variance, eps=1e-3) + affine into one per-feature
    # scale/shift.  Tiny (F,)-sized math -> leave to XLA.
    mean = stats[0] / N
    var = jnp.maximum(stats[1] / N - mean * mean, 0.0)
    scale = (gamma.astype(jnp.float32) * jax.lax.rsqrt(var + BN_EPS)).reshape(1, fdim)
    shift = (beta.astype(jnp.float32) - mean * scale[0]).reshape(1, fdim)

    # ---- pass 2: tiled normalize + ReLU (megacore-parallel over row tiles) ----
    out = pl.pallas_call(
        _apply_kernel,
        out_shape=jax.ShapeDtypeStruct((n_pad, fdim), dtype),
        grid=(num_tiles,),
        in_specs=[
            pl.BlockSpec((tile_n, din), lambda i: (i, 0)),
            pl.BlockSpec((din, fdim), lambda i: (0, 0)),
            pl.BlockSpec((1, fdim), lambda i: (0, 0)),
            pl.BlockSpec((1, fdim), lambda i: (0, 0)),
        ],
        out_specs=pl.BlockSpec((tile_n, fdim), lambda i: (i, 0)),
        compiler_params=pltpu.CompilerParams(dimension_semantics=("parallel",)),
    )(x, w, scale, shift)

    return out[:N].reshape(B, T, fdim)


def fusion_reference(lip, hand, w, b, gamma, beta):
    joint = jnp.concatenate([lip, hand], axis=2).astype(jnp.float32)  # (B, T, din)
    y = jnp.einsum("btd,df->btf", joint, w.astype(jnp.float32)) + b
    mean = jnp.mean(y, axis=(0, 1), keepdims=True)
    var = jnp.mean((y - mean) ** 2, axis=(0, 1), keepdims=True)
    y = gamma * (y - mean) / jnp.sqrt(var + BN_EPS) + beta
    return jax.nn.relu(y)


if __name__ == "__main__":
    # Small deterministic shapes: din = d_lip + d_hand = 32, fusion_dim = 32.
    B, T, d_lip, d_hand, fusion_dim = 2, 8, 16, 16, 32
    din = d_lip + d_hand

    key = jax.random.PRNGKey(0)
    k_lip, k_hand, k_w, k_b, k_g, k_beta = jax.random.split(key, 6)

    lip = jax.random.normal(k_lip, (B, T, d_lip), dtype=jnp.float32)
    hand = jax.random.normal(k_hand, (B, T, d_hand), dtype=jnp.float32)

    # Deterministic parameter init (Linear weight/bias, BN affine params).
    w = jax.random.normal(k_w, (din, fusion_dim), dtype=jnp.float32) * (1.0 / jnp.sqrt(din))
    b = jax.random.normal(k_b, (fusion_dim,), dtype=jnp.float32) * 0.01
    gamma = 1.0 + 0.1 * jax.random.normal(k_g, (fusion_dim,), dtype=jnp.float32)
    beta = 0.1 * jax.random.normal(k_beta, (fusion_dim,), dtype=jnp.float32)

    out = fusion_forward(lip, hand, w, b, gamma, beta)
    out = jax.block_until_ready(out)

    ref = fusion_reference(lip, hand, w, b, gamma, beta)
    assert out.shape == (B, T, fusion_dim)
    assert jnp.allclose(out, ref, atol=1e-4, rtol=1e-4), "mismatch vs reference"

    print("KERNEL_OK")
</pallas_src>

<mosaic_0001>
module attributes {stable_mosaic.version = 11 : i64} {
  func.func @_stats_kernel(%arg0: i32, %arg1: memref<16x32xf32, #tpu.memory_space<vmem>>, %arg2: memref<32x32xf32, #tpu.memory_space<vmem>>, %arg3: memref<2x32xf32, #tpu.memory_space<vmem>>) attributes {dimension_semantics = [#tpu.dimension_semantics<arbitrary>], iteration_bounds = array<i64: 1>, scalar_prefetch = 0 : i64, scratch_operands = 0 : i64, tpu.core_type = #tpu.core_type<tc>, window_params = [{transform_indices = @transform_0, window_bounds = array<i64: 16, 32>}, {pipeline_mode = #tpu.pipeline_mode<synchronous>, transform_indices = @transform_1, window_bounds = array<i64: 32, 32>}, {pipeline_mode = #tpu.pipeline_mode<synchronous>, transform_indices = @transform_2, window_bounds = array<i64: 2, 32>}]} {
    %c0_i32 = arith.constant 0 : i32
    %0 = arith.cmpi eq, %arg0, %c0_i32 : i32
    %1 = arith.extui %0 : i1 to i32
    %c0_i32_0 = arith.constant 0 : i32
    %2 = arith.cmpi ne, %1, %c0_i32_0 : i32
    scf.if %2 {
      %cst_13 = arith.constant 0.000000e+00 : f32
      %17 = vector.broadcast %cst_13 : f32 to vector<2x32xf32>
      %c0_14 = arith.constant 0 : index
      %c0_15 = arith.constant 0 : index
      %18 = vector.load %arg3[%c0_14, %c0_15] : memref<2x32xf32, #tpu.memory_space<vmem>>, vector<2x32xf32>
      tpu.vector_store %arg3[%c0_14, %c0_15], %17 {strides = array<i32>} : memref<2x32xf32, #tpu.memory_space<vmem>>, vector<2x32xf32>,
    } else {
    }
    %c0 = arith.constant 0 : index
    %c0_1 = arith.constant 0 : index
    %3 = vector.load %arg1[%c0, %c0_1] : memref<16x32xf32, #tpu.memory_space<vmem>>, vector<16x32xf32>
    %c0_2 = arith.constant 0 : index
    %c0_3 = arith.constant 0 : index
    %4 = vector.load %arg2[%c0_2, %c0_3] : memref<32x32xf32, #tpu.memory_space<vmem>>, vector<32x32xf32>
    %cst = arith.constant dense<0.000000e+00> : vector<16x32xf32>
    %5 = tpu.matmul %3, %4, %cst {dimension_numbers = #tpu.dot_dimension_numbers<[1], [0], [0], [1], [0, 0, 1, 1], [], []>} : vector<16x32xf32>, vector<32x32xf32>, vector<16x32xf32> -> vector<16x32xf32>
    %c0_4 = arith.constant 0 : index
    %c0_5 = arith.constant 0 : index
    %6 = vector.load %arg3[%c0_4, %c0_5] : memref<2x32xf32, #tpu.memory_space<vmem>>, vector<1x32xf32>
    %cst_6 = arith.constant dense<0.000000e+00> : vector<32xf32>
    %7 = vector.multi_reduction <add>, %5, %cst_6 [0] : vector<16x32xf32> to vector<32xf32>
    %8 = vector.shape_cast %7 : vector<32xf32> to vector<1x32xf32>
    %9 = arith.addf %6, %8 : vector<1x32xf32>
    %c0_7 = arith.constant 0 : index
    %c0_8 = arith.constant 0 : index
    %10 = vector.load %arg3[%c0_7, %c0_8] : memref<2x32xf32, #tpu.memory_space<vmem>>, vector<1x32xf32>
    tpu.vector_store %arg3[%c0_7, %c0_8], %9 {strides = array<i32>} : memref<2x32xf32, #tpu.memory_space<vmem>>, vector<1x32xf32>,
    %c1 = arith.constant 1 : index
    %c0_9 = arith.constant 0 : index
    %11 = vector.load %arg3[%c1, %c0_9] : memref<2x32xf32, #tpu.memory_space<vmem>>, vector<1x32xf32>
    %12 = arith.mulf %5, %5 : vector<16x32xf32>
    %cst_10 = arith.constant dense<0.000000e+00> : vector<32xf32>
    %13 = vector.multi_reduction <add>, %12, %cst_10 [0] : vector<16x32xf32> to vector<32xf32>
    %14 = vector.shape_cast %13 : vector<32xf32> to vector<1x32xf32>
    %15 = arith.addf %11, %14 : vector<1x32xf32>
    %c1_11 = arith.constant 1 : index
    %c0_12 = arith.constant 0 : index
    %16 = vector.load %arg3[%c1_11, %c0_12] : memref<2x32xf32, #tpu.memory_space<vmem>>, vector<1x32xf32>
    tpu.vector_store %arg3[%c1_11, %c0_12], %15 {strides = array<i32>} : memref<2x32xf32, #tpu.memory_space<vmem>>, vector<1x32xf32>,
    return
  }
  func.func @transform_0(%arg0: i32) -> (i32, i32) {
    %c0_i32 = arith.constant 0 : i32
    %c0_i32_0 = arith.constant 0 : i32
    return %arg0, %c0_i32 : i32, i32
  }
  func.func @transform_1(%arg0: i32) -> (i32, i32) {
    %c0_i32 = arith.constant 0 : i32
    %c0_i32_0 = arith.constant 0 : i32
    %c0_i32_1 = arith.constant 0 : i32
    return %c0_i32, %c0_i32_0 : i32, i32
  }
  func.func @transform_2(%arg0: i32) -> (i32, i32) {
    %c0_i32 = arith.constant 0 : i32
    %c0_i32_0 = arith.constant 0 : i32
    %c0_i32_1 = arith.constant 0 : i32
    return %c0_i32, %c0_i32_0 : i32, i32
  }
}

</mosaic_0001>

<llo_original>
// kernel: tpu_custom_call.1
$region0: #{tpu_custom_call.1}
  #allocation0 [shape = 'u32[]', space=smem, size = 0x4, offset = 0x4, fixed_abs, tag = 'smem constant byte address 0x4 - core index']
  #allocation1 [shape = 'u32[72,128]{1,0:T(1,128)}', space=vmem, size = 0x9000, scoped, tag = 'internal scratch']
  %s0 = inlined_call_operand.hbm [shape: f32[16,32], index: 0, kind: input, shape index: {}]
  %s1 = inlined_call_operand.hbm [shape: f32[32,32], index: 1, kind: input, shape index: {}]
  %s2 = inlined_call_operand.hbm [shape: f32[2,32], index: 2, kind: output, shape index: {}]
  %s3 = sld [smem:[#allocation0]]
  $region30: #{tpu_custom_call.1} parent=0
    _
  %s5 = ssub.s32 1, %s3
  %s6 = scalar_select 0, %s5, %s3
  $region1: #{tpu_custom_call.1} parent=0
    #allocation2 [shape = 'u8[8192]{0}', space=vmem, size = 0x2000, scoped, tag = 'input window, operand 0, single buffered']
    #allocation3 [shape = 's32[1]{0}', space=sflag, size = 0x4, scoped, tag = 'scoped memory for tpu_custom_call.1']
    #allocation4 [shape = 's32[1]{0}', space=sflag, size = 0x4, scoped, tag = 'scoped memory for tpu_custom_call.1']
    #allocation5 [shape = 'u8[16384]{0}', space=vmem, size = 0x4000, scoped, tag = 'input window, operand 1, single buffered']
    #allocation6 [shape = 's32[1]{0}', space=sflag, size = 0x4, scoped, tag = 'scoped memory for tpu_custom_call.1']
    #allocation7 [shape = 'u8[1024]{0}', space=vmem, size = 0x400, scoped, tag = 'output window, operand 0, single buffered']
    %7 = vsyncpa [#allocation3], 0
    %8 = vsyncpa [#allocation6], 0
    %9 = vsyncpa [#allocation4], 0
    // Predicated region
    $region2: #{tpu_custom_call.1} parent=1 // pred_check
      _
    $region3: #{tpu_custom_call.1} parent=1 // pred_check_branch
      %11 = sbr.rel (0) target = $region5
    $region4: #{tpu_custom_call.1} parent=1 // pred_region
      %13 = vsyncadd [#allocation3], 0
      %s14 = sshll.u32 %s0, 4
      %s15 = int_to_ptr.hbm [resolvable:$true] %s14
      %s16 = sshll.u32 [#allocation2], 4
      %s17 = int_to_ptr.vmem [resolvable:$true] %s16
      %22 = dma.hbm_to_vmem [thread:$0]  %s15, 256, %s17, [#allocation3], 128, 128, 8
    $region5: #{tpu_custom_call.1} parent=1 // pred_fallthru
      _
    // Predicated region
    $region6: #{tpu_custom_call.1} parent=1 // pred_check
      _
    $region7: #{tpu_custom_call.1} parent=1 // pred_check_branch
      %24 = sbr.rel (0) target = $region9
    $region8: #{tpu_custom_call.1} parent=1 // pred_region
      %26 = vsyncadd [#allocation6], 0
      %s27 = sshll.u32 %s1, 4
      %s28 = int_to_ptr.hbm [resolvable:$true] %s27
      %s29 = sshll.u32 [#allocation5], 4
      %s30 = int_to_ptr.vmem [resolvable:$true] %s29
      %35 = dma.hbm_to_vmem [thread:$0]  %s28, 512, %s30, [#allocation6], 128, 128, 8
    $region9: #{tpu_custom_call.1} parent=1 // pred_fallthru
      _
    // Predicated region
    $region10: #{tpu_custom_call.1} parent=1 // pred_check
      _
    $region11: #{tpu_custom_call.1} parent=1 // pred_check_branch
      %37 = sbr.rel (0) target = $region13
    $region12: #{tpu_custom_call.1} parent=1 // pred_region
      %39 = dma.done [#allocation3], 256
    $region13: #{tpu_custom_call.1} parent=1 // pred_fallthru
      _
    // Predicated region
    $region14: #{tpu_custom_call.1} parent=1 // pred_check
      _
    $region15: #{tpu_custom_call.1} parent=1 // pred_check_branch
      %41 = sbr.rel (0) target = $region17
    $region16: #{tpu_custom_call.1} parent=1 // pred_region
      %43 = dma.done [#allocation6], 512
    $region17: #{tpu_custom_call.1} parent=1 // pred_fallthru
      _
    %p44 = scmp.eq.s32.totalorder 0, 0
    // Predicated region
    $region18: #{tpu_custom_call.1} parent=1 // pred_check
      %p45 = pneg %p44
    $region19: #{tpu_custom_call.1} parent=1 // pred_check_branch
      %47 = sbr.rel (%p45) target = $region21
    $region20: #{tpu_custom_call.1} parent=1 // pred_region
      %vm48 = vcmask 254976
      %49 = vst.msk [vmem:[#allocation7] sm:$0x3] %vm48, 0.0
    $region21: #{tpu_custom_call.1} parent=1 // pred_fallthru
      _
    %v50 = vld [vmem:[#allocation2] sm:$0xff]
    %v51 = vld [vmem:[#allocation2 + $0x8] sm:$0xff]
    %v52 = vld [vmem:[#allocation5] sm:$0xff]
    %v53 = vld [vmem:[#allocation5 + $0x8] sm:$0xff]
    %v54 = vld [vmem:[#allocation5 + $0x10] sm:$0xff]
    %v55 = vld [vmem:[#allocation5 + $0x18] sm:$0xff]
    %vm56 = vcmask 261120
    %v58 = vsel %vm56, %v50, 0
    %v61 = vsel %vm56, %v51, 0
    %63 = vmatpush.msra.mxu0 0.0
    %64 = vmatpush.msra.mxu0 0.0
    %65 = vmatpush.msra.mxu0 0.0
    %66 = vmatpush.msra.mxu0 0.0
    %67 = vmatpush.msra.mxu0 0.0
    %68 = vmatpush.msra.mxu0 0.0
    %69 = vmatpush.msra.mxu0 0.0
    %70 = vmatpush.msra.mxu0 0.0
    %71 = vmatpush.msra.mxu0 0.0
    %72 = vmatpush.msra.mxu0 0.0
    %73 = vmatpush.msra.mxu0 0.0
    %74 = vmatpush.msra.mxu0 0.0
    %75 = vmatpush.msra.mxu0 %v55
    %76 = vmatpush.msra.mxu0 %v54
    %77 = vmatpush.msra.mxu0 %v53
    %78 = vmatpush.msra.mxu0 %v52
    %79 = vmatmul.f32.gmra.mxu0 %v58
    %v80 = vpop.f32.mrf.mxu0
    %v81 = vadd.f32 0.0, %v80
    %82 = vmatmul.f32.gmra.mxu0 %v61
    %v83 = vpop.f32.mrf.mxu0
    %v84 = vadd.f32 0.0, %v83
    %85 = vdwg.mxu0
    %v86 = vld [vmem:[#allocation7] sm:$0x1]
    %v87 = vsel %vm56, %v81, 0.0
    %v88 = vsel %vm56, %v84, 0.0
    %v89 = vadd.f32 %v87, %v88
    %v90 = vrot.slane %v89, 4
    %v91 = vadd.f32 %v89, %v90
    %v92 = vrot.slane %v91, 2
    %v93 = vadd.f32 %v91, %v92
    %v94 = vrot.slane %v93, 1
    %v95 = vadd.f32 %v93, %v94
    %v96 = vadd.f32 %v86, %v95
    %vm97 = vcmask 253952
    %98 = vst.msk [vmem:[#allocation7] sm:$0x1] %vm97, %v96
    %v99 = vld [vmem:[#allocation7 + $0x1] sm:$0x1]
    %v100 = vmul.f32 %v81, %v81
    %v101 = vmul.f32 %v84, %v84
    %v102 = vsel %vm56, %v100, 0.0
    %v103 = vsel %vm56, %v101, 0.0
    %v104 = vadd.f32 %v102, %v103
    %v105 = vrot.slane %v104, 4
    %v106 = vadd.f32 %v104, %v105
    %v107 = vrot.slane %v106, 2
    %v108 = vadd.f32 %v106, %v107
    %v109 = vrot.slane %v108, 1
    %v110 = vadd.f32 %v108, %v109
    %v111 = vadd.f32 %v99, %v110
    %112 = vst.msk [vmem:[#allocation7 + $0x1] sm:$0x1] %vm97, %v111
    // Predicated region
    $region22: #{tpu_custom_call.1} parent=1 // pred_check
      _
    $region23: #{tpu_custom_call.1} parent=1 // pred_check_branch
      %114 = sbr.rel (0) target = $region25
    $region24: #{tpu_custom_call.1} parent=1 // pred_region
      %116 = vsyncadd [#allocation4], 0
      %s118 = sshll.u32 [#allocation7], 4
      %s119 = int_to_ptr.vmem [resolvable:$true] %s118
      %s120 = sshll.u32 %s2, 4
      %s121 = int_to_ptr.hbm [resolvable:$true] %s120
      %123 = dma.vmem_to_hbm [thread:$0]  %s119, 32, %s121, [#allocation4]
    $region25: #{tpu_custom_call.1} parent=1 // pred_fallthru
      _
    // Predicated region
    $region26: #{tpu_custom_call.1} parent=1 // pred_check
      _
    $region27: #{tpu_custom_call.1} parent=1 // pred_check_branch
      %125 = sbr.rel (0) target = $region29
    $region28: #{tpu_custom_call.1} parent=1 // pred_region
      %127 = dma.done [#allocation4], 32
    $region29: #{tpu_custom_call.1} parent=1 // pred_fallthru
      _
    %128 = vsyncpa [#allocation3], 1
    %129 = vsyncpa [#allocation6], 1
    %130 = vsyncpa [#allocation4], 1

</llo_original>
